<compile_context>
chip_gen: v6e
topology: v6e:2x2x1
jax: 0.10.0
libtpu: 0.0.40
codegen_flags: <defaults>
</compile_context>

<pallas_src>
import functools
import math

import jax
import jax.numpy as jnp
from jax.experimental import pallas as pl
from jax.experimental.pallas import tpu as pltpu


_VMEM_LIMIT = 32 * 1024 * 1024          # safe on v5e/v6e/v7x (<= v7x scoped default)
_SUBLANE = {4: 8, 2: 16, 1: 32}         # sublane packing per itemsize


def _cdiv(a, b):
    return -(-a // b)


def _round_up(a, b):
    return _cdiv(a, b) * b


# --------------------------------------------------------------------------
# Kernel A: classes on sublanes, positions on lanes.  Block (1, C, MT).
# Used for the 4-D conv-feature path (free reshape of the logits) and for
# 2-D inputs with tiny C (< 8), where a row-major block would waste lanes.
# --------------------------------------------------------------------------
def _lsro_cs_kernel(x_ref, t_ref, o_ref, *, m_total, mt):
    mi = pl.program_id(1)
    x = x_ref[...].astype(jnp.float32)                     # (1, C, MT)
    t = t_ref[...].astype(jnp.float32)                     # (1, C, MT)

    x_max = jnp.max(x, axis=1, keepdims=True)              # (1, 1, MT)
    xs = x - x_max
    lse = jnp.log(jnp.sum(jnp.exp(xs), axis=1, keepdims=True))
    t_sum = jnp.sum(t, axis=1, keepdims=True)
    tx = jnp.sum(t * xs, axis=1, keepdims=True)
    loss = lse * t_sum - tx                                # (1, 1, MT)

    # Mask out-of-range positions of the (possibly partial) last block.
    pos = mi * mt + jax.lax.broadcasted_iota(jnp.int32, loss.shape, 2)
    loss = jnp.where(pos < m_total, loss, 0.0)

    p = jnp.sum(loss, axis=2, keepdims=True)               # (1, 1, 1) tile partial
    o_ref[...] = jnp.broadcast_to(p.reshape(1, 1, 1, 1), o_ref.shape).astype(o_ref.dtype)


def _choose_pos_tile(c, itemsize, m, g, target_bytes):
    sub = _SUBLANE.get(itemsize, 8)
    c_pad = _round_up(c, sub)                              # sublane padding
    mt = target_bytes // (c_pad * itemsize)
    mt = max(128, (mt // 128) * 128)
    if mt >= 512:
        mt = (mt // 512) * 512
    mt = min(mt, _round_up(m, 128))
    # Keep >= ~4 grid steps total so the parallel grid shards on v7x's 2 TCs.
    if g * _cdiv(m, mt) < 4:
        cap = _round_up(_cdiv(m, _cdiv(4, g)), 128)
        mt = min(mt, cap)
    return mt


def _lsro_classes_on_sublanes(x3, t3, target_block_bytes):
    g, c, m = x3.shape
    n_rows = g * m
    mt = _choose_pos_tile(c, x3.dtype.itemsize, m, g, target_block_bytes)
    grid_m = _cdiv(m, mt)

    kernel = functools.partial(_lsro_cs_kernel, m_total=m, mt=mt)
    out_bytes = g * grid_m * 8 * 128 * 4

    per_tile = pl.pallas_call(
        kernel,
        out_shape=jax.ShapeDtypeStruct((g, grid_m, 8, 128), jnp.float32),
        grid=(g, grid_m),
        in_specs=[
            pl.BlockSpec((1, c, mt), lambda gi, mi: (gi, 0, mi)),
            pl.BlockSpec((1, c, mt), lambda gi, mi: (gi, 0, mi)),
        ],
        out_specs=pl.BlockSpec((1, 1, 8, 128), lambda gi, mi: (gi, mi, 0, 0)),
        compiler_params=pltpu.CompilerParams(
            dimension_semantics=("parallel", "parallel"),
            vmem_limit_bytes=_VMEM_LIMIT,
        ),
        cost_estimate=pl.CostEstimate(
            flops=6 * n_rows * c,
            transcendentals=n_rows * (c + 1),
            bytes_accessed=(x3.size * x3.dtype.itemsize
                            + t3.size * t3.dtype.itemsize + out_bytes),
        ),
    )(x3, t3)

    return jnp.sum(per_tile[:, :, 0, 0]) / jnp.float32(n_rows)


# --------------------------------------------------------------------------
# Kernel B: row-major (N, C) blocks, classes on lanes.  Block (MR, C).
# Used for 2-D inputs with C >= 8 -- no wrapper transposes, HBM traffic is
# exactly one read of each input (lane padding only costs VMEM, not HBM).
# --------------------------------------------------------------------------
def _lsro_rm_kernel(x_ref, t_ref, o_ref, *, n_total, mr):
    ri = pl.program_id(0)
    x = x_ref[...].astype(jnp.float32)                     # (MR, C)
    t = t_ref[...].astype(jnp.float32)                     # (MR, C)

    x_max = jnp.max(x, axis=1, keepdims=True)              # (MR, 1)
    xs = x - x_max
    lse = jnp.log(jnp.sum(jnp.exp(xs), axis=1, keepdims=True))
    t_sum = jnp.sum(t, axis=1, keepdims=True)
    tx = jnp.sum(t * xs, axis=1, keepdims=True)
    loss = lse * t_sum - tx                                # (MR, 1)

    row = ri * mr + jax.lax.broadcasted_iota(jnp.int32, loss.shape, 0)
    loss = jnp.where(row < n_total, loss, 0.0)

    p = jnp.sum(loss, axis=0, keepdims=True)               # (1, 1) tile partial
    o_ref[...] = jnp.broadcast_to(p.reshape(1, 1, 1), o_ref.shape).astype(o_ref.dtype)


def _choose_row_tile(c, itemsize, n, target_bytes):
    sub = _SUBLANE.get(itemsize, 8)
    c_pad = _round_up(c, 128)                              # lane padding in VMEM
    rows = target_bytes // (c_pad * itemsize)
    rows = max(sub, (rows // sub) * sub)
    rows = min(rows, _round_up(n, sub))
    if _cdiv(n, rows) < 4:                                 # v7x 2-TC sharding
        cap = max(sub, _round_up(_cdiv(n, 4), sub))
        rows = min(rows, cap)
    return rows


def _lsro_row_major(x, t, target_block_bytes):
    n, c = x.shape
    mr = _choose_row_tile(c, x.dtype.itemsize, n, target_block_bytes)
    grid_n = _cdiv(n, mr)

    kernel = functools.partial(_lsro_rm_kernel, n_total=n, mr=mr)
    out_bytes = grid_n * 8 * 128 * 4

    per_tile = pl.pallas_call(
        kernel,
        out_shape=jax.ShapeDtypeStruct((grid_n, 8, 128), jnp.float32),
        grid=(grid_n,),
        in_specs=[
            pl.BlockSpec((mr, c), lambda ri: (ri, 0)),
            pl.BlockSpec((mr, c), lambda ri: (ri, 0)),
        ],
        out_specs=pl.BlockSpec((1, 8, 128), lambda ri: (ri, 0, 0)),
        compiler_params=pltpu.CompilerParams(
            dimension_semantics=("parallel",),
            vmem_limit_bytes=_VMEM_LIMIT,
        ),
        cost_estimate=pl.CostEstimate(
            flops=6 * n * c,
            transcendentals=n * (c + 1),
            bytes_accessed=(x.size * x.dtype.itemsize
                            + t.size * t.dtype.itemsize + out_bytes),
        ),
    )(x, t)

    return jnp.sum(per_tile[:, 0, 0]) / jnp.float32(n)


# --------------------------------------------------------------------------
# Public wrapper: LSROloss.forward
# --------------------------------------------------------------------------
def lsro_loss(inp, target, flg=None, *, target_block_bytes=3 * 1024 * 1024):
    """Pallas implementation of LSROloss.forward.

    inp:    (B, C, H, W) or (N, C) logits (f32 or bf16)
    target: (N, C) soft labels, N = B*H*W for the 4-D case
    flg:    unused (signature parity with the PyTorch module)
    """
    del flg  # unused in the reference forward pass

    if inp.ndim > 2:
        b, c = inp.shape[0], inp.shape[1]
        m = math.prod(inp.shape[2:])
        x3 = inp.reshape(b, c, m)                                  # free reshape
        # One pass over target; the logits need no transpose at all.
        t3 = jnp.transpose(target.reshape(b, m, c), (0, 2, 1))
        return _lsro_classes_on_sublanes(x3, t3, target_block_bytes)

    n, c = inp.shape
    if c >= 8:
        # Row-major path: zero wrapper transposes, contiguous DMA.
        return _lsro_row_major(inp, target, target_block_bytes)

    # Tiny C: keep classes on sublanes so lanes stay dense (C on lanes would
    # waste 124+/128 lanes); two small transposes are the lesser evil here.
    x3 = jnp.transpose(inp, (1, 0))[None]
    t3 = jnp.transpose(target, (1, 0))[None]
    return _lsro_classes_on_sublanes(x3, t3, target_block_bytes)


def lsro_loss_ref(inp, target):
    """Pure-JAX reference mirroring the PyTorch module."""
    if inp.ndim > 2:
        b, c = inp.shape[0], inp.shape[1]
        inp = inp.reshape(b, c, -1)
        inp = jnp.transpose(inp, (0, 2, 1)).reshape(-1, c)
    x = inp.astype(jnp.float32)
    x = x - jnp.max(x, axis=1, keepdims=True)
    log_sm = x - jnp.log(jnp.sum(jnp.exp(x), axis=1, keepdims=True))
    return jnp.mean(-jnp.sum(target.astype(jnp.float32) * log_sm, axis=1))


if __name__ == "__main__":
    key = jax.random.PRNGKey(0)
    k1, k2, k3, k4, k5, k6, k7, k8 = jax.random.split(key, 8)

    def check(loss, ref):
        jax.block_until_ready(loss)
        assert jnp.allclose(loss, ref, atol=2e-5, rtol=2e-5), (loss, ref)

    # 1) 4-D conv-feature path (NCHW), classes-on-sublanes kernel.
    B, C, H, W = 2, 4, 16, 16
    N = B * H * W
    x = jax.random.normal(k1, (B, C, H, W), dtype=jnp.float32)
    tgt = jax.nn.softmax(jax.random.normal(k2, (N, C), dtype=jnp.float32), axis=1)
    flg = jnp.zeros((N,), dtype=jnp.int32)   # unused by forward()
    check(lsro_loss(x, tgt, flg), lsro_loss_ref(x, tgt))

    # 2) 4-D path with a remainder tile (exercises the in-kernel position mask).
    B2, C2, H2, W2 = 2, 4, 10, 10
    N2 = B2 * H2 * W2
    x2 = jax.random.normal(k3, (B2, C2, H2, W2), dtype=jnp.float32)
    t2 = jax.nn.softmax(jax.random.normal(k4, (N2, C2), dtype=jnp.float32), axis=1)
    check(lsro_loss(x2, t2, None), lsro_loss_ref(x2, t2))

    # 3) 2-D classifier-logit path, row-major kernel (no wrapper transposes).
    N3, C3 = 1000, 16
    x3 = jax.random.normal(k5, (N3, C3), dtype=jnp.float32)
    t3 = jax.nn.softmax(jax.random.normal(k6, (N3, C3), dtype=jnp.float32), axis=1)
    check(lsro_loss(x3, t3, None), lsro_loss_ref(x3, t3))

    # 4) 2-D tiny-C fallback (classes-on-sublanes, g=1) with a remainder.
    N4, C4 = 50, 4
    x4 = jax.random.normal(k7, (N4, C4), dtype=jnp.float32)
    t4 = jax.nn.softmax(jax.random.normal(k8, (N4, C4), dtype=jnp.float32), axis=1)
    check(lsro_loss(x4, t4, None), lsro_loss_ref(x4, t4))

    print("KERNEL_OK")
</pallas_src>

<mosaic_0001>
module attributes {stable_mosaic.version = 11 : i64} {
  func.func @_lsro_cs_kernel(%arg0: i32, %arg1: i32, %arg2: memref<1x4x128xf32, #tpu.memory_space<vmem>>, %arg3: memref<1x4x128xf32, #tpu.memory_space<vmem>>, %arg4: memref<1x1x8x128xf32, #tpu.memory_space<vmem>>) attributes {dimension_semantics = [#tpu.dimension_semantics<parallel>, #tpu.dimension_semantics<parallel>], iteration_bounds = array<i64: 2, 2>, scalar_prefetch = 0 : i64, scratch_operands = 0 : i64, tpu.core_type = #tpu.core_type<tc>, window_params = [{transform_indices = @transform_0, window_bounds = array<i64: 1, 4, 128>}, {transform_indices = @transform_1, window_bounds = array<i64: 1, 4, 128>}, {transform_indices = @transform_2, window_bounds = array<i64: 1, 1, 8, 128>}]} {
    %c0 = arith.constant 0 : index
    %c0_0 = arith.constant 0 : index
    %c0_1 = arith.constant 0 : index
    %0 = vector.load %arg2[%c0, %c0_0, %c0_1] : memref<1x4x128xf32, #tpu.memory_space<vmem>>, vector<1x4x128xf32>
    %c0_2 = arith.constant 0 : index
    %c0_3 = arith.constant 0 : index
    %c0_4 = arith.constant 0 : index
    %1 = vector.load %arg3[%c0_2, %c0_3, %c0_4] : memref<1x4x128xf32, #tpu.memory_space<vmem>>, vector<1x4x128xf32>
    %cst = arith.constant dense<0xFF800000> : vector<1x128xf32>
    %2 = vector.multi_reduction <maximumf>, %0, %cst [1] : vector<1x4x128xf32> to vector<1x128xf32>
    %3 = vector.shape_cast %2 : vector<1x128xf32> to vector<1x1x128xf32>
    %4 = vector.broadcast %3 : vector<1x1x128xf32> to vector<1x4x128xf32>
    %5 = arith.subf %0, %4 : vector<1x4x128xf32>
    %6 = math.exp %5 : vector<1x4x128xf32>
    %cst_5 = arith.constant dense<0.000000e+00> : vector<1x128xf32>
    %7 = vector.multi_reduction <add>, %6, %cst_5 [1] : vector<1x4x128xf32> to vector<1x128xf32>
    %8 = vector.shape_cast %7 : vector<1x128xf32> to vector<1x1x128xf32>
    %9 = math.log %8 : vector<1x1x128xf32>
    %cst_6 = arith.constant dense<0.000000e+00> : vector<1x128xf32>
    %10 = vector.multi_reduction <add>, %1, %cst_6 [1] : vector<1x4x128xf32> to vector<1x128xf32>
    %11 = vector.shape_cast %10 : vector<1x128xf32> to vector<1x1x128xf32>
    %12 = arith.mulf %1, %5 : vector<1x4x128xf32>
    %cst_7 = arith.constant dense<0.000000e+00> : vector<1x128xf32>
    %13 = vector.multi_reduction <add>, %12, %cst_7 [1] : vector<1x4x128xf32> to vector<1x128xf32>
    %14 = vector.shape_cast %13 : vector<1x128xf32> to vector<1x1x128xf32>
    %15 = arith.mulf %9, %11 : vector<1x1x128xf32>
    %16 = arith.subf %15, %14 : vector<1x1x128xf32>
    %c128_i32 = arith.constant 128 : i32
    %17 = arith.muli %arg1, %c128_i32 : i32
    %18 = tpu.iota {dimensions = array<i32: 2>} : vector<1x1x128xi32>
    %19 = vector.broadcast %17 : i32 to vector<1x1x128xi32>
    %20 = arith.addi %19, %18 : vector<1x1x128xi32>
    %c256_i32 = arith.constant 256 : i32
    %21 = vector.broadcast %c256_i32 : i32 to vector<1x1x128xi32>
    %22 = arith.cmpi slt, %20, %21 : vector<1x1x128xi32>
    %cst_8 = arith.constant 0.000000e+00 : f32
    %23 = vector.broadcast %cst_8 : f32 to vector<1x1x128xf32>
    %24 = arith.select %22, %16, %23 : vector<1x1x128xi1>, vector<1x1x128xf32>
    %cst_9 = arith.constant dense<0.000000e+00> : vector<1x1xf32>
    %25 = vector.multi_reduction <add>, %24, %cst_9 [2] : vector<1x1x128xf32> to vector<1x1xf32>
    %26 = vector.shape_cast %25 : vector<1x1xf32> to vector<1x1x1xf32>
    %27 = vector.shape_cast %26 : vector<1x1x1xf32> to vector<1x1x1x1xf32>
    %28 = vector.shape_cast %27 : vector<1x1x1x1xf32> to vector<1x1x1x1xf32>
    %29 = vector.broadcast %28 : vector<1x1x1x1xf32> to vector<1x1x8x128xf32>
    %c0_10 = arith.constant 0 : index
    %c0_11 = arith.constant 0 : index
    %c0_12 = arith.constant 0 : index
    %c0_13 = arith.constant 0 : index
    %30 = vector.load %arg4[%c0_10, %c0_11, %c0_12, %c0_13] : memref<1x1x8x128xf32, #tpu.memory_space<vmem>>, vector<1x1x8x128xf32>
    tpu.vector_store %arg4[%c0_10, %c0_11, %c0_12, %c0_13], %29 {strides = array<i32>} : memref<1x1x8x128xf32, #tpu.memory_space<vmem>>, vector<1x1x8x128xf32>,
    return
  }
  func.func @transform_0(%arg0: i32, %arg1: i32) -> (i32, i32, i32) {
    %c0_i32 = arith.constant 0 : i32
    %c0_i32_0 = arith.constant 0 : i32
    return %arg0, %c0_i32, %arg1 : i32, i32, i32
  }
  func.func @transform_1(%arg0: i32, %arg1: i32) -> (i32, i32, i32) {
    %c0_i32 = arith.constant 0 : i32
    %c0_i32_0 = arith.constant 0 : i32
    return %arg0, %c0_i32, %arg1 : i32, i32, i32
  }
  func.func @transform_2(%arg0: i32, %arg1: i32) -> (i32, i32, i32, i32) {
    %c0_i32 = arith.constant 0 : i32
    %c0_i32_0 = arith.constant 0 : i32
    %c0_i32_1 = arith.constant 0 : i32
    return %arg0, %arg1, %c0_i32, %c0_i32_0 : i32, i32, i32, i32
  }
}

</mosaic_0001>

<llo_original>
// kernel: tpu_custom_call.1
$region0: #{tpu_custom_call.1}
  #allocation0 [shape = 'u32[]', space=smem, size = 0x4, offset = 0x4, fixed_abs, tag = 'smem constant byte address 0x4 - core index']
  #allocation1 [shape = 'u32[144,128]{1,0:T(1,128)}', space=vmem, size = 0x12000, scoped, tag = 'internal scratch']
  %s0 = inlined_call_operand.hbm [shape: f32[2,4,256], index: 0, kind: input, shape index: {}]
  %s1 = inlined_call_operand.hbm [shape: f32[2,4,256], index: 1, kind: input, shape index: {}]
  %s2 = inlined_call_operand.hbm [shape: f32[2,2,8,128], index: 2, kind: output, shape index: {}]
  %s3 = sld [smem:[#allocation0]]
  $region49: #{tpu_custom_call.1} parent=0
    _
  %s5 = ssub.s32 1, %s3
  %s6 = scalar_select 0, %s5, %s3
  $region1: #{tpu_custom_call.1} parent=0
    #allocation2 [shape = 'u8[4096]{0}', space=vmem, size = 0x1000, scoped, tag = 'input window, operand 0']
    #allocation3 [shape = 's32[2]{0}', space=sflag, size = 0x8, scoped, tag = 'scoped memory for tpu_custom_call.1']
    #allocation4 [shape = 's32[2]{0}', space=sflag, size = 0x8, scoped, tag = 'scoped memory for tpu_custom_call.1']
    #allocation5 [shape = 'u8[4096]{0}', space=vmem, size = 0x1000, scoped, tag = 'input window, operand 1']
    #allocation6 [shape = 's32[2]{0}', space=sflag, size = 0x8, scoped, tag = 'scoped memory for tpu_custom_call.1']
    #allocation7 [shape = 'u8[8192]{0}', space=vmem, size = 0x2000, scoped, tag = 'output window, operand 0']
    %7 = vsyncpa [#allocation3], 0
    %s8 = scalar_lea.sflag [#allocation3], 1
    %9 = vsyncpa %s8, 0
    %10 = vsyncpa [#allocation6], 0
    %s11 = scalar_lea.sflag [#allocation6], 1
    %12 = vsyncpa %s11, 0
    %13 = vsyncpa [#allocation4], 0
    %s14 = scalar_lea.sflag [#allocation4], 1
    %15 = vsyncpa %s14, 0
    loop: start=0, step=1, limit=6
    $region2: #{tpu_custom_call.1} parent=1 // loop_pre_header
      _
    $region3: #{tpu_custom_call.1} parent=1 // loop_header
      %s17 = sphi 0, %s21
      %p18 = scmp.ge.s32.totalorder %s17, 6
      %s24 = sphi 0, %s36
      %s25 = sphi 0, %s32
      %s26 = sphi 0, %s24
      %s27 = sphi 0, %s25
      %s28 = sphi 0, %s26
      %s29 = sphi 0, %s27
      %s41 = sphi 0, %s43
      %s44 = sphi 0, %s41
      %s45 = sphi 0, %s44
      %s61 = sphi 0, %s45
      %s69 = sphi 0, %s71
      %s72 = sphi 0, %s69
      %s73 = sphi 0, %s72
      %s89 = sphi 0, %s73
      %s97 = sphi 0, %s99
      %s100 = sphi 0, %s97
      %s101 = sphi 0, %s100
      %s117 = sphi 0, %s101
    $region4: #{tpu_custom_call.1} parent=1 // loop_header_branch
      %20 = sbr.rel (%p18) target = $region8
    $region5: #{tpu_custom_call.1} parent=1 // loop_body
      %s22 = ssub.s32 %s17, 1
      %s23 = ssub.s32 %s17, 2
      %s30 = sadd.s32 1, %s25
      %p31 = scmp.ge.s32.totalorder %s30, 2
      %s32 = scalar_select %p31, 0, %s30
      %s33 = sadd.s32 1, %s24
      %s34 = scalar_select %p31, %s33, %s24
      %p35 = scmp.ge.s32.totalorder %s34, 2
      %s36 = scalar_select %p35, 0, %s34
      %s37 = ssub.s32 %s24, %s36
      %s38 = ssub.s32 %s25, %s32
      %s39 = sor.u32 %s37, %s38
      %p40 = scmp.eq.s32.totalorder %s39, 0
      %s42 = sadd.s32 %s41, 1
      %s43 = scalar_select %p40, %s41, %s42
      %p46 = pneg %p40
      %p47 = scmp.eq.s32.totalorder %s17, 3
      %p48 = por %p46, %p47
      %p49 = scmp.ne.s32.totalorder %s41, %s44
      %p50 = scmp.eq.s32.totalorder %s17, 0
      %p51 = por %p49, %p50
      %p52 = scmp.ne.s32.totalorder %s41, %s44
      %p53 = scmp.eq.s32.totalorder %s22, 3
      %p54 = por %p52, %p53
      %p55 = scmp.ne.s32.totalorder %s44, %s45
      %p56 = scmp.eq.s32.totalorder %s22, 0
      %p57 = por %p55, %p56
      %p58 = scmp.ne.s32.totalorder %s44, %s45
      %p59 = scmp.eq.s32.totalorder %s23, 3
      %p60 = por %p58, %p59
      %p62 = scmp.ne.s32.totalorder %s45, %s61
      %p63 = scmp.eq.s32.totalorder %s23, 0
      %p64 = por %p62, %p63
      %s65 = ssub.s32 %s24, %s36
      %s66 = ssub.s32 %s25, %s32
      %s67 = sor.u32 %s65, %s66
      %p68 = scmp.eq.s32.totalorder %s67, 0
      %s70 = sadd.s32 %s69, 1
      %s71 = scalar_select %p68, %s69, %s70
      %p74 = pneg %p68
      %p75 = scmp.eq.s32.totalorder %s17, 3
      %p76 = por %p74, %p75
      %p77 = scmp.ne.s32.totalorder %s69, %s72
      %p78 = scmp.eq.s32.totalorder %s17, 0
      %p79 = por %p77, %p78
      %p80 = scmp.ne.s32.totalorder %s69, %s72
      %p81 = scmp.eq.s32.totalorder %s22, 3
      %p82 = por %p80, %p81
      %p83 = scmp.ne.s32.totalorder %s72, %s73
      %p84 = scmp.eq.s32.totalorder %s22, 0
      %p85 = por %p83, %p84
      %p86 = scmp.ne.s32.totalorder %s72, %s73
      %p87 = scmp.eq.s32.totalorder %s23, 3
      %p88 = por %p86, %p87
      %p90 = scmp.ne.s32.totalorder %s73, %s89
      %p91 = scmp.eq.s32.totalorder %s23, 0
      %p92 = por %p90, %p91
      %s93 = ssub.s32 %s24, %s36
      %s94 = ssub.s32 %s25, %s32
      %s95 = sor.u32 %s93, %s94
      %p96 = scmp.eq.s32.totalorder %s95, 0
      %s98 = sadd.s32 %s97, 1
      %s99 = scalar_select %p96, %s97, %s98
      %p102 = pneg %p96
      %p103 = scmp.eq.s32.totalorder %s17, 3
      %p104 = por %p102, %p103
      %p105 = scmp.ne.s32.totalorder %s97, %s100
      %p106 = scmp.eq.s32.totalorder %s17, 0
      %p107 = por %p105, %p106
      %p108 = scmp.ne.s32.totalorder %s97, %s100
      %p109 = scmp.eq.s32.totalorder %s22, 3
      %p110 = por %p108, %p109
      %p111 = scmp.ne.s32.totalorder %s100, %s101
      %p112 = scmp.eq.s32.totalorder %s22, 0
      %p113 = por %p111, %p112
      %p114 = scmp.ne.s32.totalorder %s100, %s101
      %p115 = scmp.eq.s32.totalorder %s23, 3
      %p116 = por %p114, %p115
      %p118 = scmp.ne.s32.totalorder %s101, %s117
      %p119 = scmp.eq.s32.totalorder %s23, 0
      %p120 = por %p118, %p119
      %p121 = scmp.le.s32.totalorder 1, %s17
      %p122 = scmp.lt.s32.totalorder %s17, 5
      %p123 = pnand %p121, %p122
      %p124 = pneg %p123
      // Predicated region
      $region9: #{tpu_custom_call.1} parent=5 // pred_check
        _
      $region10: #{tpu_custom_call.1} parent=5 // pred_check_branch
        %126 = sbr.rel (%p123) target = $region12
      $region11: #{tpu_custom_call.1} parent=5 // pred_region
        %s127 = ssub.s32 %s17, 1
      $region12: #{tpu_custom_call.1} parent=5 // pred_fallthru
        _
      %p128 = scmp.lt.s32.totalorder %s17, 4
      // Predicated region
      $region13: #{tpu_custom_call.1} parent=5 // pred_check
        %p129 = pneg %p128
      $region14: #{tpu_custom_call.1} parent=5 // pred_check_branch
        %131 = sbr.rel (%p129) target = $region16
      $region15: #{tpu_custom_call.1} parent=5 // pred_region
        // Predicated region
        $region17: #{tpu_custom_call.1} parent=15 // pred_check
          %p132 = pneg %p51
        $region18: #{tpu_custom_call.1} parent=15 // pred_check_branch
          %134 = sbr.rel (%p132) target = $region20
        $region19: #{tpu_custom_call.1} parent=15 // pred_region
          %s135 = sand.u32 %s41, 1
          %s136 = scalar_lea.sflag [#allocation3], %s135
          %s137 = sand.u32 %s41, 1
          %s138 = smul.addr %s137, 4
          %s139 = scalar_lea.vmem [#allocation2], %s138
          %s141 = ssub.s32 64, 64
          %142 = vsyncadd %s136, %s141
          %s143 = smul.addr %s24, 2
          %s144 = sadd.s32 %s25, %s143
          %s145 = smul.addr %s144, 64
          %s146 = scalar_lea.hbm %s0, %s145
          %s148 = sshll.u32 %s139, 4
          %s149 = int_to_ptr.vmem [resolvable:$true] %s148
          %151 = dma.hbm_to_vmem [thread:$0]  %s146, 64, %s149, %s136
        $region20: #{tpu_custom_call.1} parent=15 // pred_fallthru
          _
        // Predicated region
        $region21: #{tpu_custom_call.1} parent=15 // pred_check
          %p152 = pneg %p79
        $region22: #{tpu_custom_call.1} parent=15 // pred_check_branch
          %154 = sbr.rel (%p152) target = $region24
        $region23: #{tpu_custom_call.1} parent=15 // pred_region
          %s155 = sand.u32 %s69, 1
          %s156 = scalar_lea.sflag [#allocation6], %s155
          %s157 = sand.u32 %s69, 1
          %s158 = smul.addr %s157, 4
          %s159 = scalar_lea.vmem [#allocation5], %s158
          %s161 = ssub.s32 64, 64
          %162 = vsyncadd %s156, %s161
          %s163 = smul.addr %s24, 2
          %s164 = sadd.s32 %s25, %s163
          %s165 = smul.addr %s164, 64
          %s166 = scalar_lea.hbm %s1, %s165
          %s168 = sshll.u32 %s159, 4
          %s169 = int_to_ptr.vmem [resolvable:$true] %s168
          %171 = dma.hbm_to_vmem [thread:$0]  %s166, 64, %s169, %s156
        $region24: #{tpu_custom_call.1} parent=15 // pred_fallthru
          _
      $region16: #{tpu_custom_call.1} parent=5 // pred_fallthru
        _
      %p172 = scmp.le.s32.totalorder 1, %s17
      %p173 = scmp.lt.s32.totalorder %s17, 5
      %p174 = pnand %p172, %p173
      %p175 = pneg %p174
      // Predicated region
      $region25: #{tpu_custom_call.1} parent=5 // pred_check
        _
      $region26: #{tpu_custom_call.1} parent=5 // pred_check_branch
        %177 = sbr.rel (%p174) target = $region28
      $region27: #{tpu_custom_call.1} parent=5 // pred_region
        %s178 = ssub.s32 %s17, 1
        %s179 = sand.u32 %s44, 1
        %s180 = scalar_lea.sflag [#allocation3], %s179
        %s181 = sand.u32 %s44, 1
        %s182 = smul.addr %s181, 4
        %s183 = scalar_lea.vmem [#allocation2], %s182
        // Predicated region
        $region29: #{tpu_custom_call.1} parent=27 // pred_check
          %p184 = pneg %p57
        $region30: #{tpu_custom_call.1} parent=27 // pred_check_branch
          %186 = sbr.rel (%p184) target = $region32
        $region31: #{tpu_custom_call.1} parent=27 // pred_region
          %187 = dma.done %s180, 64
        $region32: #{tpu_custom_call.1} parent=27 // pred_fallthru
          _
        %s188 = sand.u32 %s72, 1
        %s189 = scalar_lea.sflag [#allocation6], %s188
        %s190 = sand.u32 %s72, 1
        %s191 = smul.addr %s190, 4
        %s192 = scalar_lea.vmem [#allocation5], %s191
        // Predicated region
        $region33: #{tpu_custom_call.1} parent=27 // pred_check
          %p193 = pneg %p85
        $region34: #{tpu_custom_call.1} parent=27 // pred_check_branch
          %195 = sbr.rel (%p193) target = $region36
        $region35: #{tpu_custom_call.1} parent=27 // pred_region
          %196 = dma.done %s189, 64
        $region36: #{tpu_custom_call.1} parent=27 // pred_fallthru
          _
        %s197 = sand.u32 %s44, 1
        %s198 = scalar_lea.sflag [#allocation3], %s197
        %s199 = sand.u32 %s44, 1
        %s200 = smul.addr %s199, 4
        %s201 = scalar_lea.vmem [#allocation2], %s200
        %p202 = pneg %p57
        %p203 = pneg %p54
        %s204 = sand.u32 %s72, 1
        %s205 = scalar_lea.sflag [#allocation6], %s204
        %s206 = sand.u32 %s72, 1
        %s207 = smul.addr %s206, 4
        %s208 = scalar_lea.vmem [#allocation5], %s207
        %p209 = pneg %p85
        %p210 = pneg %p82
        %p211 = pneg %p113
        %p212 = pneg %p110
        %s213 = sand.u32 %s100, 1
        %s214 = scalar_lea.sflag [#allocation4], %s213
        %s215 = sand.u32 %s100, 1
        %s216 = smul.addr %s215, 8
        %s217 = scalar_lea.vmem [#allocation7], %s216
        %v218 = vld [vmem:[%s183] sm:$0xf]
        %v219 = vld [vmem:[%s192] sm:$0xf]
        %vm220 = vcmask 1043456
        %v221 = vsel %vm220, %v218, -inf
        %v222 = vrot.slane %v221, 4
        %v223 = vmax.f32 %v221, %v222
        %v224 = vrot.slane %v223, 2
        %v225 = vmax.f32 %v223, %v224
        %v226 = vrot.slane %v225, 1
        %v227 = vmax.f32 %v225, %v226
        %v228 = vsub.f32 %v218, %v227
        %v229 = vmul.f32 %v228, 1.442695
        %v230 = vpow.pop %v229
        %v231 = vsel %vm220, %v230, 0.0
        %v232 = vrot.slane %v231, 4
        %v233 = vadd.f32 %v231, %v232
        %v234 = vrot.slane %v233, 2
        %v235 = vadd.f32 %v233, %v234
        %v236 = vrot.slane %v235, 1
        %v237 = vadd.f32 %v235, %v236
        %v238 = vlog2.pop %v237
        %v239 = vmul.f32 %v238, 0.6931472
        %v240 = vsel %vm220, %v219, 0.0
        %v241 = vrot.slane %v240, 4
        %v242 = vadd.f32 %v240, %v241
        %v243 = vrot.slane %v242, 2
        %v244 = vadd.f32 %v242, %v243
        %v245 = vrot.slane %v244, 1
        %v246 = vadd.f32 %v244, %v245
        %v247 = vmul.f32 %v219, %v228
        %v248 = vsel %vm220, %v247, 0.0
        %v249 = vrot.slane %v248, 4
        %v250 = vadd.f32 %v248, %v249
        %v251 = vrot.slane %v250, 2
        %v252 = vadd.f32 %v250, %v251
        %v253 = vrot.slane %v252, 1
        %v254 = vadd.f32 %v252, %v253
        %v255 = vmul.f32 %v239, %v246
        %v256 = vsub.f32 %v255, %v254
        %s257 = smul.u32 %s27, 128
        %v258 = vlaneseq
        %v259 = vand.u32 %v258, 127
        %v260 = vstv %s257
        %v261 = vadd.s32 %v260, %v259
        %vm262 = vcmp.lt.s32.totalorder %v261, 256
        %v263 = vsel %vm262, %v256, 0.0
        %264 = vadd.xlane.f32.xlu0 %v263
        %v265 = vpop.xlane.xlu0 %264
        %266 = vst [vmem:[%s217] sm:$0xff] %v265
        %s267 = sand.u32 %s100, 1
        %s268 = scalar_lea.sflag [#allocation4], %s267
        %s269 = sand.u32 %s100, 1
        %s270 = smul.addr %s269, 8
        %s271 = scalar_lea.vmem [#allocation7], %s270
        // Predicated region
        $region37: #{tpu_custom_call.1} parent=27 // pred_check
          %p272 = pneg %p110
        $region38: #{tpu_custom_call.1} parent=27 // pred_check_branch
          %274 = sbr.rel (%p272) target = $region40
        $region39: #{tpu_custom_call.1} parent=27 // pred_region
          %s276 = ssub.s32 128, 128
          %277 = vsyncadd %s268, %s276
          %s278 = smul.addr %s26, 2
          %s279 = sadd.s32 %s27, %s278
          %s280 = smul.addr %s279, 128
          %s281 = scalar_lea.hbm %s2, %s280
          %s283 = sshll.u32 %s271, 4
          %s284 = int_to_ptr.vmem [resolvable:$true] %s283
          %286 = dma.vmem_to_hbm [thread:$0]  %s284, 128, %s281, %s268
        $region40: #{tpu_custom_call.1} parent=27 // pred_fallthru
          _
      $region28: #{tpu_custom_call.1} parent=5 // pred_fallthru
        _
      %p287 = scmp.le.s32.totalorder 2, %s17
      // Predicated region
      $region41: #{tpu_custom_call.1} parent=5 // pred_check
        %p288 = pneg %p287
      $region42: #{tpu_custom_call.1} parent=5 // pred_check_branch
        %290 = sbr.rel (%p288) target = $region44
      $region43: #{tpu_custom_call.1} parent=5 // pred_region
        %s291 = ssub.s32 %s17, 2
        // Predicated region
        $region45: #{tpu_custom_call.1} parent=43 // pred_check
          %p292 = pneg %p116
        $region46: #{tpu_custom_call.1} parent=43 // pred_check_branch
          %294 = sbr.rel (%p292) target = $region48
        $region47: #{tpu_custom_call.1} parent=43 // pred_region
          %s295 = sand.u32 %s101, 1
          %s296 = scalar_lea.sflag [#allocation4], %s295
          %s297 = sand.u32 %s101, 1
          %s298 = smul.addr %s297, 8
          %s299 = scalar_lea.vmem [#allocation7], %s298
          %300 = dma.done %s296, 128
        $region48: #{tpu_custom_call.1} parent=43 // pred_fallthru
          _
      $region44: #{tpu_custom_call.1} parent=5 // pred_fallthru
        _
    $region6: #{tpu_custom_call.1} parent=1 // loop_footer
      %s21 = sadd.s32 1, %s17
    $region7: #{tpu_custom_call.1} parent=1 // loop_footer_branch
      %16 = sbr.rel target = $region3
    $region8: #{tpu_custom_call.1} parent=1 // loop_exit
      _
    %301 = vsyncpa [#allocation3], 1
    %s302 = scalar_lea.sflag [#allocation3], 1
    %303 = vsyncpa %s302, 1
    %304 = vsyncpa [#allocation6], 1
    %s305 = scalar_lea.sflag [#allocation6], 1
    %306 = vsyncpa %s305, 1
    %307 = vsyncpa [#allocation4], 1
    %s308 = scalar_lea.sflag [#allocation4], 1
    %309 = vsyncpa %s308, 1

</llo_original>
